<compile_context>
chip_gen: v5e
topology: v5e:2x2
jax: 0.10.0
libtpu: 0.0.40
codegen_flags: <defaults>
</compile_context>

<pallas_src>
import jax
import jax.numpy as jnp
from jax.experimental import pallas as pl
from jax.experimental.pallas import tpu as pltpu

TILE_B_MAX = 4096  # rows per grid step; multiple of 1024, keeps VMEM use ~15 MiB worst case


def mlp_kernel(x_ref, w1_ref, b1_ref, w2_ref, b2_ref, w3_ref, b3_ref, o_ref):
    # x arrives as f32 straight from HBM; cast to bf16 in-register for the MXU.
    x = x_ref[...].astype(jnp.bfloat16)                                       # (TB, in)
    h1 = jnp.dot(x, w1_ref[...], preferred_element_type=jnp.float32) + b1_ref[...]
    h1 = jnp.maximum(h1, 0.0).astype(jnp.bfloat16)                            # (TB, 16)
    h2 = jnp.dot(h1, w2_ref[...], preferred_element_type=jnp.float32) + b2_ref[...]
    h2 = jnp.maximum(h2, 0.0).astype(jnp.bfloat16)                            # (TB, 8)
    o_ref[...] = (jnp.dot(h2, w3_ref[...], preferred_element_type=jnp.float32)
                  + b3_ref[...]).astype(o_ref.dtype)                          # (TB, C) f32


def _round_up(n, m):
    return ((n + m - 1) // m) * m


def _pick_tile_b(B):
    if B <= 512:
        # Tiny problem: one tile, rounded to 16 (bf16 packs 16 rows per sublane group).
        return _round_up(max(B, 16), 16)
    # Larger problems: >= 2 grid steps (so both v7x TensorCores get work), tiles capped
    # at TILE_B_MAX so per-step DMA is large relative to per-step overhead.
    return min(TILE_B_MAX, _round_up(pl.cdiv(B, 2), 16))


def multi_classification_forward(x, params):
    """x: (B, input_dim) float32.  params: dict of (in, out)-layout weights / (1, out) biases."""
    # Weights are tiny and DMA'd once (constant index_map), so casting them in the wrapper
    # is negligible; biases stay f32 and add into the f32 accumulator.
    w1 = params["w1"].astype(jnp.bfloat16)
    w2 = params["w2"].astype(jnp.bfloat16)
    w3 = params["w3"].astype(jnp.bfloat16)
    b1 = params["b1"].astype(jnp.float32)
    b2 = params["b2"].astype(jnp.float32)
    b3 = params["b3"].astype(jnp.float32)

    B, in_dim = x.shape
    C = w3.shape[1]

    tile_b = _pick_tile_b(B)
    num_tiles = pl.cdiv(B, tile_b)

    const2 = lambda i: (0, 0)  # weights/biases: same block every step -> resident in VMEM

    flops = 2 * B * (in_dim * 16 + 16 * 8 + 8 * C)
    bytes_accessed = (B * in_dim * 4 + B * C * 4
                      + (w1.size + w2.size + w3.size) * 2
                      + (b1.size + b2.size + b3.size) * 4)

    out = pl.pallas_call(
        mlp_kernel,
        out_shape=jax.ShapeDtypeStruct((B, C), jnp.float32),
        grid=(num_tiles,),
        in_specs=[
            pl.BlockSpec((tile_b, in_dim), lambda i: (i, 0)),   # x: tiled over batch (f32)
            pl.BlockSpec(w1.shape, const2),
            pl.BlockSpec(b1.shape, const2),
            pl.BlockSpec(w2.shape, const2),
            pl.BlockSpec(b2.shape, const2),
            pl.BlockSpec(w3.shape, const2),
            pl.BlockSpec(b3.shape, const2),
        ],
        out_specs=pl.BlockSpec((tile_b, C), lambda i: (i, 0)),
        compiler_params=pltpu.CompilerParams(
            dimension_semantics=("parallel",),      # shard batch grid across v7x's 2 TCs
            vmem_limit_bytes=32 * 1024 * 1024,      # covers v5e's 16 MiB default; safe on v7x
        ),
        cost_estimate=pl.CostEstimate(
            flops=flops, transcendentals=0, bytes_accessed=bytes_accessed),
    )(x, w1, b1, w2, b2, w3, b3)

    return out


def init_params(key, input_dim, num_classes):
    """Deterministic synthetic init (uniform, roughly like PyTorch's default)."""
    ks = jax.random.split(key, 6)

    def lin(kw, kb, fan_in, fan_out):
        bound = 1.0 / jnp.sqrt(fan_in)
        w = jax.random.uniform(kw, (fan_in, fan_out), jnp.float32, -bound, bound)
        b = jax.random.uniform(kb, (1, fan_out), jnp.float32, -bound, bound)
        return w, b

    w1, b1 = lin(ks[0], ks[1], input_dim, 16)
    w2, b2 = lin(ks[2], ks[3], 16, 8)
    w3, b3 = lin(ks[4], ks[5], 8, num_classes)
    return {"w1": w1, "b1": b1, "w2": w2, "b2": b2, "w3": w3, "b3": b3}


def reference_forward_bf16(x, p):
    """Pure-JAX reference using the same bf16-operand / f32-accumulate recipe as the kernel."""
    xb = x.astype(jnp.bfloat16)
    w1 = p["w1"].astype(jnp.bfloat16)
    w2 = p["w2"].astype(jnp.bfloat16)
    w3 = p["w3"].astype(jnp.bfloat16)
    h1 = jnp.maximum(jnp.dot(xb, w1, preferred_element_type=jnp.float32) + p["b1"], 0.0)
    h1 = h1.astype(jnp.bfloat16)
    h2 = jnp.maximum(jnp.dot(h1, w2, preferred_element_type=jnp.float32) + p["b2"], 0.0)
    h2 = h2.astype(jnp.bfloat16)
    return jnp.dot(h2, w3, preferred_element_type=jnp.float32) + p["b3"]


def reference_forward_f32(x, p):
    """True f32 forward, matching the PyTorch module's math."""
    h1 = jnp.maximum(x @ p["w1"] + p["b1"], 0.0)
    h2 = jnp.maximum(h1 @ p["w2"] + p["b2"], 0.0)
    return h2 @ p["w3"] + p["b3"]


if __name__ == "__main__":
    key = jax.random.PRNGKey(0)
    k_x, k_p = jax.random.split(key)

    # Small shapes consistent with the module; batch=50 exercises the ragged-last-block path.
    batch, input_dim, num_classes = 50, 32, 10
    x = jax.random.normal(k_x, (batch, input_dim), jnp.float32)
    params = init_params(k_p, input_dim, num_classes)

    out = jax.block_until_ready(multi_classification_forward(x, params))
    assert out.shape == (batch, num_classes)

    # Tight check vs the bf16-matched recipe (validates kernel plumbing) and a looser check
    # vs the true f32 forward (validates module semantics within bf16 error).
    ref_bf16 = reference_forward_bf16(x, params)
    ref_f32 = reference_forward_f32(x, params)
    err_bf16 = float(jnp.max(jnp.abs(out - ref_bf16)))
    err_f32 = float(jnp.max(jnp.abs(out - ref_f32)))
    assert jnp.allclose(out, ref_bf16, atol=5e-3, rtol=5e-3), err_bf16
    assert jnp.allclose(out, ref_f32, atol=5e-2, rtol=5e-2), err_f32

    print("KERNEL_OK")
</pallas_src>

<mosaic_0001>
module attributes {stable_mosaic.version = 11 : i64} {
  func.func @mlp_kernel(%arg0: i32, %arg1: memref<64x32xf32, #tpu.memory_space<vmem>>, %arg2: memref<32x16xbf16, #tpu.memory_space<vmem>>, %arg3: memref<1x16xf32, #tpu.memory_space<vmem>>, %arg4: memref<16x8xbf16, #tpu.memory_space<vmem>>, %arg5: memref<1x8xf32, #tpu.memory_space<vmem>>, %arg6: memref<8x10xbf16, #tpu.memory_space<vmem>>, %arg7: memref<1x10xf32, #tpu.memory_space<vmem>>, %arg8: memref<64x10xf32, #tpu.memory_space<vmem>>) attributes {dimension_semantics = [#tpu.dimension_semantics<parallel>], iteration_bounds = array<i64: 1>, scalar_prefetch = 0 : i64, scratch_operands = 0 : i64, tpu.core_type = #tpu.core_type<tc>, window_params = [{transform_indices = @transform_0, window_bounds = array<i64: 64, 32>}, {pipeline_mode = #tpu.pipeline_mode<synchronous>, transform_indices = @transform_1, window_bounds = array<i64: 32, 16>}, {pipeline_mode = #tpu.pipeline_mode<synchronous>, transform_indices = @transform_2, window_bounds = array<i64: 1, 16>}, {pipeline_mode = #tpu.pipeline_mode<synchronous>, transform_indices = @transform_3, window_bounds = array<i64: 16, 8>}, {pipeline_mode = #tpu.pipeline_mode<synchronous>, transform_indices = @transform_4, window_bounds = array<i64: 1, 8>}, {pipeline_mode = #tpu.pipeline_mode<synchronous>, transform_indices = @transform_5, window_bounds = array<i64: 8, 10>}, {pipeline_mode = #tpu.pipeline_mode<synchronous>, transform_indices = @transform_6, window_bounds = array<i64: 1, 10>}, {transform_indices = @transform_7, window_bounds = array<i64: 64, 10>}]} {
    %c0 = arith.constant 0 : index
    %c0_0 = arith.constant 0 : index
    %0 = vector.load %arg1[%c0, %c0_0] : memref<64x32xf32, #tpu.memory_space<vmem>>, vector<64x32xf32>
    %1 = arith.truncf %0 : vector<64x32xf32> to vector<64x32xbf16>
    %c0_1 = arith.constant 0 : index
    %c0_2 = arith.constant 0 : index
    %2 = vector.load %arg2[%c0_1, %c0_2] : memref<32x16xbf16, #tpu.memory_space<vmem>>, vector<32x16xbf16>
    %cst = arith.constant dense<0.000000e+00> : vector<64x16xf32>
    %3 = tpu.matmul %1, %2, %cst {dimension_numbers = #tpu.dot_dimension_numbers<[1], [0], [0], [1], [0, 0, 1, 1], [], []>} : vector<64x32xbf16>, vector<32x16xbf16>, vector<64x16xf32> -> vector<64x16xf32>
    %c0_3 = arith.constant 0 : index
    %c0_4 = arith.constant 0 : index
    %4 = vector.load %arg3[%c0_3, %c0_4] : memref<1x16xf32, #tpu.memory_space<vmem>>, vector<1x16xf32>
    %5 = vector.broadcast %4 : vector<1x16xf32> to vector<64x16xf32>
    %6 = arith.addf %3, %5 : vector<64x16xf32>
    %cst_5 = arith.constant 0.000000e+00 : f32
    %7 = vector.broadcast %cst_5 : f32 to vector<64x16xf32>
    %8 = arith.maximumf %6, %7 : vector<64x16xf32>
    %9 = arith.truncf %8 : vector<64x16xf32> to vector<64x16xbf16>
    %c0_6 = arith.constant 0 : index
    %c0_7 = arith.constant 0 : index
    %10 = vector.load %arg4[%c0_6, %c0_7] : memref<16x8xbf16, #tpu.memory_space<vmem>>, vector<16x8xbf16>
    %cst_8 = arith.constant dense<0.000000e+00> : vector<64x8xf32>
    %11 = tpu.matmul %9, %10, %cst_8 {dimension_numbers = #tpu.dot_dimension_numbers<[1], [0], [0], [1], [0, 0, 1, 1], [], []>} : vector<64x16xbf16>, vector<16x8xbf16>, vector<64x8xf32> -> vector<64x8xf32>
    %c0_9 = arith.constant 0 : index
    %c0_10 = arith.constant 0 : index
    %12 = vector.load %arg5[%c0_9, %c0_10] : memref<1x8xf32, #tpu.memory_space<vmem>>, vector<1x8xf32>
    %13 = vector.broadcast %12 : vector<1x8xf32> to vector<64x8xf32>
    %14 = arith.addf %11, %13 : vector<64x8xf32>
    %cst_11 = arith.constant 0.000000e+00 : f32
    %15 = vector.broadcast %cst_11 : f32 to vector<64x8xf32>
    %16 = arith.maximumf %14, %15 : vector<64x8xf32>
    %17 = arith.truncf %16 : vector<64x8xf32> to vector<64x8xbf16>
    %c0_12 = arith.constant 0 : index
    %c0_13 = arith.constant 0 : index
    %18 = vector.load %arg6[%c0_12, %c0_13] : memref<8x10xbf16, #tpu.memory_space<vmem>>, vector<8x10xbf16>
    %cst_14 = arith.constant dense<0.000000e+00> : vector<64x10xf32>
    %19 = tpu.matmul %17, %18, %cst_14 {dimension_numbers = #tpu.dot_dimension_numbers<[1], [0], [0], [1], [0, 0, 1, 1], [], []>} : vector<64x8xbf16>, vector<8x10xbf16>, vector<64x10xf32> -> vector<64x10xf32>
    %c0_15 = arith.constant 0 : index
    %c0_16 = arith.constant 0 : index
    %20 = vector.load %arg7[%c0_15, %c0_16] : memref<1x10xf32, #tpu.memory_space<vmem>>, vector<1x10xf32>
    %21 = vector.broadcast %20 : vector<1x10xf32> to vector<64x10xf32>
    %22 = arith.addf %19, %21 : vector<64x10xf32>
    %c0_17 = arith.constant 0 : index
    %c0_18 = arith.constant 0 : index
    %23 = vector.load %arg8[%c0_17, %c0_18] : memref<64x10xf32, #tpu.memory_space<vmem>>, vector<64x10xf32>
    tpu.vector_store %arg8[%c0_17, %c0_18], %22 {strides = array<i32>} : memref<64x10xf32, #tpu.memory_space<vmem>>, vector<64x10xf32>,
    return
  }
  func.func @transform_0(%arg0: i32) -> (i32, i32) {
    %c0_i32 = arith.constant 0 : i32
    %c0_i32_0 = arith.constant 0 : i32
    return %arg0, %c0_i32 : i32, i32
  }
  func.func @transform_1(%arg0: i32) -> (i32, i32) {
    %c0_i32 = arith.constant 0 : i32
    %c0_i32_0 = arith.constant 0 : i32
    %c0_i32_1 = arith.constant 0 : i32
    return %c0_i32, %c0_i32_0 : i32, i32
  }
  func.func @transform_2(%arg0: i32) -> (i32, i32) {
    %c0_i32 = arith.constant 0 : i32
    %c0_i32_0 = arith.constant 0 : i32
    %c0_i32_1 = arith.constant 0 : i32
    return %c0_i32, %c0_i32_0 : i32, i32
  }
  func.func @transform_3(%arg0: i32) -> (i32, i32) {
    %c0_i32 = arith.constant 0 : i32
    %c0_i32_0 = arith.constant 0 : i32
    %c0_i32_1 = arith.constant 0 : i32
    return %c0_i32, %c0_i32_0 : i32, i32
  }
  func.func @transform_4(%arg0: i32) -> (i32, i32) {
    %c0_i32 = arith.constant 0 : i32
    %c0_i32_0 = arith.constant 0 : i32
    %c0_i32_1 = arith.constant 0 : i32
    return %c0_i32, %c0_i32_0 : i32, i32
  }
  func.func @transform_5(%arg0: i32) -> (i32, i32) {
    %c0_i32 = arith.constant 0 : i32
    %c0_i32_0 = arith.constant 0 : i32
    %c0_i32_1 = arith.constant 0 : i32
    return %c0_i32, %c0_i32_0 : i32, i32
  }
  func.func @transform_6(%arg0: i32) -> (i32, i32) {
    %c0_i32 = arith.constant 0 : i32
    %c0_i32_0 = arith.constant 0 : i32
    %c0_i32_1 = arith.constant 0 : i32
    return %c0_i32, %c0_i32_0 : i32, i32
  }
  func.func @transform_7(%arg0: i32) -> (i32, i32) {
    %c0_i32 = arith.constant 0 : i32
    %c0_i32_0 = arith.constant 0 : i32
    return %arg0, %c0_i32 : i32, i32
  }
}

</mosaic_0001>

<llo_original>
// kernel: tpu_custom_call.1
$region0: #{tpu_custom_call.1}
  #allocation0 [shape = 'u32[]', space=smem, size = 0x4, offset = 0x4, fixed_abs, tag = 'smem constant byte address 0x4 - core index']
  #allocation1 [shape = 'u32[72,128]{1,0:T(1,128)}', space=vmem, size = 0x9000, scoped, tag = 'internal scratch']
  %s0 = inlined_call_operand.vmem [shape: f32[50,32], index: 0, kind: input, shape index: {}]
  %s1 = inlined_call_operand.vmem [shape: bf16[32,16], index: 1, kind: input, shape index: {}]
  %s2 = inlined_call_operand.vmem [shape: f32[1,16], index: 2, kind: input, shape index: {}]
  %s3 = inlined_call_operand.vmem [shape: bf16[16,8], index: 3, kind: input, shape index: {}]
  %s4 = inlined_call_operand.vmem [shape: f32[1,8], index: 4, kind: input, shape index: {}]
  %s5 = inlined_call_operand.vmem [shape: bf16[8,10], index: 5, kind: input, shape index: {}]
  %s6 = inlined_call_operand.vmem [shape: f32[1,10], index: 6, kind: input, shape index: {}]
  %s7 = inlined_call_operand.vmem [shape: f32[50,10], index: 7, kind: output, shape index: {}]
  %s8 = sld [smem:[#allocation0]]
  $region72: #{tpu_custom_call.1} parent=0
    _
  %s10 = ssub.s32 1, %s8
  %s11 = scalar_select 0, %s10, %s8
  $region1: #{tpu_custom_call.1} parent=0
    #allocation2 [shape = 'u8[32768]{0}', space=vmem, size = 0x8000, scoped, tag = 'output window, operand 0, single buffered']
    // Predicated region
    $region2: #{tpu_custom_call.1} parent=1 // pred_check
      _
    $region3: #{tpu_custom_call.1} parent=1 // pred_check_branch
      %13 = sbr.rel (0) target = $region5
    $region4: #{tpu_custom_call.1} parent=1 // pred_region
      _
    $region5: #{tpu_custom_call.1} parent=1 // pred_fallthru
      _
    // Predicated region
    $region6: #{tpu_custom_call.1} parent=1 // pred_check
      _
    $region7: #{tpu_custom_call.1} parent=1 // pred_check_branch
      %15 = sbr.rel (0) target = $region9
    $region8: #{tpu_custom_call.1} parent=1 // pred_region
      _
    $region9: #{tpu_custom_call.1} parent=1 // pred_fallthru
      _
    // Predicated region
    $region10: #{tpu_custom_call.1} parent=1 // pred_check
      _
    $region11: #{tpu_custom_call.1} parent=1 // pred_check_branch
      %17 = sbr.rel (0) target = $region13
    $region12: #{tpu_custom_call.1} parent=1 // pred_region
      _
    $region13: #{tpu_custom_call.1} parent=1 // pred_fallthru
      _
    // Predicated region
    $region14: #{tpu_custom_call.1} parent=1 // pred_check
      _
    $region15: #{tpu_custom_call.1} parent=1 // pred_check_branch
      %19 = sbr.rel (0) target = $region17
    $region16: #{tpu_custom_call.1} parent=1 // pred_region
      _
    $region17: #{tpu_custom_call.1} parent=1 // pred_fallthru
      _
    // Predicated region
    $region18: #{tpu_custom_call.1} parent=1 // pred_check
      _
    $region19: #{tpu_custom_call.1} parent=1 // pred_check_branch
      %21 = sbr.rel (0) target = $region21
    $region20: #{tpu_custom_call.1} parent=1 // pred_region
      _
    $region21: #{tpu_custom_call.1} parent=1 // pred_fallthru
      _
    // Predicated region
    $region22: #{tpu_custom_call.1} parent=1 // pred_check
      _
    $region23: #{tpu_custom_call.1} parent=1 // pred_check_branch
      %23 = sbr.rel (0) target = $region25
    $region24: #{tpu_custom_call.1} parent=1 // pred_region
      _
    $region25: #{tpu_custom_call.1} parent=1 // pred_fallthru
      _
    // Predicated region
    $region26: #{tpu_custom_call.1} parent=1 // pred_check
      _
    $region27: #{tpu_custom_call.1} parent=1 // pred_check_branch
      %25 = sbr.rel (0) target = $region29
    $region28: #{tpu_custom_call.1} parent=1 // pred_region
      _
    $region29: #{tpu_custom_call.1} parent=1 // pred_fallthru
      _
    %v27 = vld [vmem:[%s0] sm:$0xff]
    %v28 = vld [vmem:[%s0 + $0x8] sm:$0xff]
    %v29 = vld [vmem:[%s0 + $0x10] sm:$0xff]
    %v30 = vld [vmem:[%s0 + $0x18] sm:$0xff]
    %v31 = vld [vmem:[%s0 + $0x20] sm:$0xff]
    %v32 = vld [vmem:[%s0 + $0x28] sm:$0xff]
    %v33 = vld [vmem:[%s0 + $0x30] sm:$0xff]
    %v34 = vld [vmem:[%s0 + $0x38] sm:$0xff]
    %v35 = vpack.c.bf16 %v28, %v27
    %v36 = vpack.c.bf16 %v30, %v29
    %v37 = vpack.c.bf16 %v32, %v31
    %v38 = vpack.c.bf16 %v34, %v33
    %v39 = vld [vmem:[%s1] sm:$0xf]
    %v40 = vld [vmem:[%s1 + $0x4] sm:$0xf]
    %v41 = vld [vmem:[%s1 + $0x8] sm:$0xf]
    %v42 = vld [vmem:[%s1 + $0xc] sm:$0xf]
    %v43 = vld [vmem:[%s2] sm:$0x1]
    %v45 = vperm.slane %v43, 0
    %v51 = vunpack.c.l.b16 %v39
    %v52 = vunpack.c.l.b16 %v40
    %v53 = vunpack.c.l.b16 %v41
    %v54 = vunpack.c.l.b16 %v42
    %v55 = vpack.c.b16 %v52, %v51
    %v56 = vpack.c.b16 %v54, %v53
    %vm59 = vcmask 261120
    %v61 = vsel %vm59, %v35, 0
    %v64 = vsel %vm59, %v36, 0
    %v67 = vsel %vm59, %v37, 0
    %v70 = vsel %vm59, %v38, 0
    %72 = vmatpush.bf16.msra.mxu0 0
    %73 = vmatpush.bf16.msra.mxu0 0
    %74 = vmatpush.bf16.msra.mxu0 0
    %75 = vmatpush.bf16.msra.mxu0 0
    %76 = vmatpush.bf16.msra.mxu0 0
    %77 = vmatpush.bf16.msra.mxu0 0
    %78 = vmatpush.bf16.msra.mxu0 %v56
    %79 = vmatpush.bf16.msra.mxu0 %v55
    %80 = vmatmul.bf16.gmra.mxu0 %v61
    %v81 = vpop.f32.mrf.mxu0
    %v82 = vadd.f32 %v45, %v81
    %v83 = vpop.f32.mrf.mxu0
    %v84 = vadd.f32 %v45, %v83
    %85 = vmatmul.bf16.gmra.mxu0 %v64
    %v86 = vpop.f32.mrf.mxu0
    %v87 = vadd.f32 %v45, %v86
    %v88 = vpop.f32.mrf.mxu0
    %v89 = vadd.f32 %v45, %v88
    %90 = vmatmul.bf16.gmra.mxu0 %v67
    %v91 = vpop.f32.mrf.mxu0
    %v92 = vadd.f32 %v45, %v91
    %v93 = vpop.f32.mrf.mxu0
    %v94 = vadd.f32 %v45, %v93
    %95 = vmatmul.bf16.gmra.mxu0 %v70
    %v96 = vpop.f32.mrf.mxu0
    %v97 = vadd.f32 %v45, %v96
    %v98 = vpop.f32.mrf.mxu0
    %v99 = vadd.f32 %v45, %v98
    %100 = vdwg.mxu0
    %v101 = vmax.f32 %v82, 0.0
    %v102 = vmax.f32 %v84, 0.0
    %v103 = vmax.f32 %v87, 0.0
    %v104 = vmax.f32 %v89, 0.0
    %v105 = vmax.f32 %v92, 0.0
    %v106 = vmax.f32 %v94, 0.0
    %v107 = vmax.f32 %v97, 0.0
    %v108 = vmax.f32 %v99, 0.0
    %v109 = vpack.c.bf16 %v102, %v101
    %v110 = vpack.c.bf16 %v104, %v103
    %v111 = vpack.c.bf16 %v106, %v105
    %v112 = vpack.c.bf16 %v108, %v107
    %v113 = vld [vmem:[%s3] sm:$0xf]
    %v114 = vld [vmem:[%s3 + $0x4] sm:$0xf]
    %v115 = vld [vmem:[%s4] sm:$0x1]
    %v117 = vperm.slane %v115, 0
    %v121 = vunpack.c.l.b16 %v113
    %v122 = vunpack.c.l.b16 %v114
    %v123 = vpack.c.b16 %v122, %v121
    %vm125 = vcmask 130048
    %v127 = vsel %vm125, %v109, 0
    %v130 = vsel %vm125, %v110, 0
    %v133 = vsel %vm125, %v111, 0
    %v136 = vsel %vm125, %v112, 0
    %138 = vmatpush.bf16.msra.mxu0 0
    %139 = vmatpush.bf16.msra.mxu0 0
    %140 = vmatpush.bf16.msra.mxu0 0
    %141 = vmatpush.bf16.msra.mxu0 0
    %142 = vmatpush.bf16.msra.mxu0 0
    %143 = vmatpush.bf16.msra.mxu0 0
    %144 = vmatpush.bf16.msra.mxu0 0
    %145 = vmatpush.bf16.msra.mxu0 %v123
    %146 = vmatmul.bf16.gmra.mxu0 %v127
    %v147 = vpop.f32.mrf.mxu0
    %v148 = vadd.f32 %v117, %v147
    %v149 = vpop.f32.mrf.mxu0
    %v150 = vadd.f32 %v117, %v149
    %151 = vmatmul.bf16.gmra.mxu0 %v130
    %v152 = vpop.f32.mrf.mxu0
    %v153 = vadd.f32 %v117, %v152
    %v154 = vpop.f32.mrf.mxu0
    %v155 = vadd.f32 %v117, %v154
    %156 = vmatmul.bf16.gmra.mxu0 %v133
    %v157 = vpop.f32.mrf.mxu0
    %v158 = vadd.f32 %v117, %v157
    %v159 = vpop.f32.mrf.mxu0
    %v160 = vadd.f32 %v117, %v159
    %161 = vmatmul.bf16.gmra.mxu0 %v136
    %v162 = vpop.f32.mrf.mxu0
    %v163 = vadd.f32 %v117, %v162
    %v164 = vpop.f32.mrf.mxu0
    %v165 = vadd.f32 %v117, %v164
    %166 = vdwg.mxu0
    %v167 = vmax.f32 %v148, 0.0
    %v168 = vmax.f32 %v150, 0.0
    %v169 = vmax.f32 %v153, 0.0
    %v170 = vmax.f32 %v155, 0.0
    %v171 = vmax.f32 %v158, 0.0
    %v172 = vmax.f32 %v160, 0.0
    %v173 = vmax.f32 %v163, 0.0
    %v174 = vmax.f32 %v165, 0.0
    %v175 = vpack.c.bf16 %v168, %v167
    %v176 = vpack.c.bf16 %v170, %v169
    %v177 = vpack.c.bf16 %v172, %v171
    %v178 = vpack.c.bf16 %v174, %v173
    %v179 = vld [vmem:[%s5] sm:$0xf]
    %v180 = vld [vmem:[%s6] sm:$0x1]
    %v182 = vperm.slane %v180, 0
    %vm184 = vcmask 64512
    %v186 = vsel %vm184, %v175, 0
    %v189 = vsel %vm184, %v176, 0
    %v192 = vsel %vm184, %v177, 0
    %v195 = vsel %vm184, %v178, 0
    %vm197 = vcmask 1043456
    %v199 = vsel %vm197, %v179, 0
    %201 = vmatpush.bf16.msra.mxu0 0
    %202 = vmatpush.bf16.msra.mxu0 0
    %203 = vmatpush.bf16.msra.mxu0 0
    %204 = vmatpush.bf16.msra.mxu0 0
    %205 = vmatpush.bf16.msra.mxu0 0
    %206 = vmatpush.bf16.msra.mxu0 0
    %207 = vmatpush.bf16.msra.mxu0 0
    %208 = vmatpush.bf16.msra.mxu0 %v199
    %209 = vmatmul.bf16.gmra.mxu0 %v186
    %v210 = vpop.f32.mrf.mxu0
    %v211 = vadd.f32 %v182, %v210
    %v212 = vpop.f32.mrf.mxu0
    %v213 = vadd.f32 %v182, %v212
    %214 = vmatmul.bf16.gmra.mxu0 %v189
    %v215 = vpop.f32.mrf.mxu0
    %v216 = vadd.f32 %v182, %v215
    %v217 = vpop.f32.mrf.mxu0
    %v218 = vadd.f32 %v182, %v217
    %219 = vmatmul.bf16.gmra.mxu0 %v192
    %v220 = vpop.f32.mrf.mxu0
    %v221 = vadd.f32 %v182, %v220
    %v222 = vpop.f32.mrf.mxu0
    %v223 = vadd.f32 %v182, %v222
    %224 = vmatmul.bf16.gmra.mxu0 %v195
    %v225 = vpop.f32.mrf.mxu0
    %v226 = vadd.f32 %v182, %v225
    %v227 = vpop.f32.mrf.mxu0
    %v228 = vadd.f32 %v182, %v227
    %229 = vdwg.mxu0
    %vm230 = vcmask 80896
    %231 = vst.msk [vmem:[#allocation2] sm:$0xff] %vm230, %v211
    %232 = vst.msk [vmem:[#allocation2 + $0x8] sm:$0xff] %vm230, %v213
    %233 = vst.msk [vmem:[#allocation2 + $0x10] sm:$0xff] %vm230, %v216
    %234 = vst.msk [vmem:[#allocation2 + $0x18] sm:$0xff] %vm230, %v218
    %235 = vst.msk [vmem:[#allocation2 + $0x20] sm:$0xff] %vm230, %v221
    %236 = vst.msk [vmem:[#allocation2 + $0x28] sm:$0xff] %vm230, %v223
    %237 = vst.msk [vmem:[#allocation2 + $0x30] sm:$0xff] %vm230, %v226
    %238 = vst.msk [vmem:[#allocation2 + $0x38] sm:$0xff] %vm230, %v228
    // Predicated region
    $region30: #{tpu_custom_call.1} parent=1 // pred_check
      _
    $region31: #{tpu_custom_call.1} parent=1 // pred_check_branch
      %240 = sbr.rel (0) target = $region33
    $region32: #{tpu_custom_call.1} parent=1 // pred_region
      // Predicated region
      $region34: #{tpu_custom_call.1} parent=32 // pred_check
        _
      $region35: #{tpu_custom_call.1} parent=32 // pred_check_branch
        %242 = sbr.rel (0) target = $region37
      $region36: #{tpu_custom_call.1} parent=32 // pred_region
        // Predicated region
        $region38: #{tpu_custom_call.1} parent=36 // pred_check
          _
        $region39: #{tpu_custom_call.1} parent=36 // pred_check_branch
          %244 = sbr.rel (0) target = $region41
        $region40: #{tpu_custom_call.1} parent=36 // pred_region
          // Predicated region
          $region53: #{tpu_custom_call.1} parent=40 // pred_check
            _
          $region54: #{tpu_custom_call.1} parent=40 // pred_check_branch
            %272 = sbr.rel (0) target = $region56
          $region55: #{tpu_custom_call.1} parent=40 // pred_region
            loop: start=0, step=1, limit=1
            $region57: #{tpu_custom_call.1} parent=55 // loop_pre_header
              _
            $region58: #{tpu_custom_call.1} parent=55 // loop_header
              %s274 = sphi 0, %s278
              %p275 = scmp.ge.s32.totalorder %s274, 1
              %s279 = sphi [#allocation2], [#allocation2]
              %s280 = sphi %s7, %s7
            $region59: #{tpu_custom_call.1} parent=55 // loop_header_branch
              %277 = sbr.rel (%p275) target = $region63
            $region60: #{tpu_custom_call.1} parent=55 // loop_body
              %v281 = vld [vmem:[%s279] sm:$0xff]
              %282 = vst [vmem:[%s280] sm:$0xff] %v281
              %v283 = vld [vmem:[%s279 + $0x8] sm:$0xff]
              %284 = vst [vmem:[%s280 + $0x8] sm:$0xff] %v283
              %v285 = vld [vmem:[%s279 + $0x10] sm:$0xff]
              %286 = vst [vmem:[%s280 + $0x10] sm:$0xff] %v285
              %v287 = vld [vmem:[%s279 + $0x18] sm:$0xff]
              %288 = vst [vmem:[%s280 + $0x18] sm:$0xff] %v287
              %v289 = vld [vmem:[%s279 + $0x20] sm:$0xff]
              %290 = vst [vmem:[%s280 + $0x20] sm:$0xff] %v289
              %v291 = vld [vmem:[%s279 + $0x28] sm:$0xff]
              %292 = vst [vmem:[%s280 + $0x28] sm:$0xff] %v291
              %v293 = vld [vmem:[%s279 + $0x30] sm:$0xff]
              %294 = vst [vmem:[%s280 + $0x30] sm:$0xff] %v293
            $region61: #{tpu_custom_call.1} parent=55 // loop_footer
              %s278 = sadd.s32 1, %s274
            $region62: #{tpu_custom_call.1} parent=55 // loop_footer_branch
              %273 = sbr.rel target = $region58
            $region63: #{tpu_custom_call.1} parent=55 // loop_exit
              _
          $region56: #{tpu_custom_call.1} parent=40 // pred_fallthru
            _
          // Predicated region
          $region64: #{tpu_custom_call.1} parent=40 // pred_check
            _
          $region65: #{tpu_custom_call.1} parent=40 // pred_check_branch
            %296 = sbr.rel target = $region67
          $region66: #{tpu_custom_call.1} parent=40 // pred_region
            _
          $region67: #{tpu_custom_call.1} parent=40 // pred_fallthru
            _
        $region41: #{tpu_custom_call.1} parent=36 // pred_fallthru
          _
        // Predicated region
        $region42: #{tpu_custom_call.1} parent=36 // pred_check
          _
        $region43: #{tpu_custom_call.1} parent=36 // pred_check_branch
          %246 = sbr.rel target = $region45
        $region44: #{tpu_custom_call.1} parent=36 // pred_region
          %s248 = ssub.s32 256, 1
          loop: start=0, step=1, limit=1
          $region46: #{tpu_custom_call.1} parent=44 // loop_pre_header
            _
          $region47: #{tpu_custom_call.1} parent=44 // loop_header
            %s250 = sphi 0, %s254
            %p251 = scmp.ge.s32.totalorder %s250, 1
            %s255 = sphi [#allocation2], [#allocation2]
            %s256 = sphi %s7, %s7
          $region48: #{tpu_custom_call.1} parent=44 // loop_header_branch
            %253 = sbr.rel (%p251) target = $region52
          $region49: #{tpu_custom_call.1} parent=44 // loop_body
            %v257 = vld [vmem:[%s255] sm:%s248]
            %258 = vst [vmem:[%s256] sm:%s248] %v257
            %v259 = vld [vmem:[%s255 + $0x8] sm:%s248]
            %260 = vst [vmem:[%s256 + $0x8] sm:%s248] %v259
            %v261 = vld [vmem:[%s255 + $0x10] sm:%s248]
            %262 = vst [vmem:[%s256 + $0x10] sm:%s248] %v261
            %v263 = vld [vmem:[%s255 + $0x18] sm:%s248]
            %264 = vst [vmem:[%s256 + $0x18] sm:%s248] %v263
            %v265 = vld [vmem:[%s255 + $0x20] sm:%s248]
            %266 = vst [vmem:[%s256 + $0x20] sm:%s248] %v265
            %v267 = vld [vmem:[%s255 + $0x28] sm:%s248]
            %268 = vst [vmem:[%s256 + $0x28] sm:%s248] %v267
            %v269 = vld [vmem:[%s255 + $0x30] sm:%s248]
            %270 = vst [vmem:[%s256 + $0x30] sm:%s248] %v269
          $region50: #{tpu_custom_call.1} parent=44 // loop_footer
            %s254 = sadd.s32 1, %s250
          $region51: #{tpu_custom_call.1} parent=44 // loop_footer_branch
            %249 = sbr.rel target = $region47
          $region52: #{tpu_custom_call.1} parent=44 // loop_exit
            _
        $region45: #{tpu_custom_call.1} parent=36 // pred_fallthru
          _
      $region37: #{tpu_custom_call.1} parent=32 // pred_fallthru
        _
      %297 = vnop
    $region33: #{tpu_custom_call.1} parent=1 // pred_fallthru
      _
    // Predicated region
    $region68: #{tpu_custom_call.1} parent=1 // pred_check
      _
    $region69: #{tpu_custom_call.1} parent=1 // pred_check_branch
      %299 = sbr.rel (0) target = $region71
    $region70: #{tpu_custom_call.1} parent=1 // pred_region
      _
    $region71: #{tpu_custom_call.1} parent=1 // pred_fallthru
      _

</llo_original>
